<compile_context>
chip_gen: v7x
topology: tpu7x:2x2x1
jax: 0.10.0
libtpu: 0.0.40
codegen_flags: <defaults>
</compile_context>

<pallas_src>
import math

import jax
import jax.numpy as jnp
from jax.experimental import pallas as pl
from jax.experimental.pallas import tpu as pltpu


def _layerscale_kernel(x_ref, gamma_ref, o_ref):
    # x_ref: (TILE_ROWS, TILE_DIM) in VMEM; gamma_ref: (1, TILE_DIM) in VMEM.
    # Pure VPU elementwise multiply; gamma broadcasts over the row axis.
    o_ref[...] = x_ref[...] * gamma_ref[...]


def _round_up(n: int, m: int) -> int:
    return ((n + m - 1) // m) * m


def layer_scale(
    x: jax.Array,
    gamma: jax.Array,
    *,
    per_tile_bytes: int = 5 * 1024 * 1024,   # ~5 MiB tile: roofline on v6e, v7x-safe
    max_tile_dim: int = 4096,                # multiple of 128; bounds VMEM for huge dims
    donate_x: bool = False,                  # alias x's buffer to the output (inplace-ish)
) -> jax.Array:
    """Computes x * gamma with gamma broadcast along the last dim."""
    orig_shape = x.shape
    dim = orig_shape[-1]
    assert gamma.shape == (dim,), f"gamma must have shape ({dim},), got {gamma.shape}"

    out_dtype = x.dtype
    # NOTE: gamma is cast to x.dtype before the multiply. For bf16 x / f32 gamma
    # this differs slightly from multiplying in f32 then casting; acceptable for
    # LayerScale (gamma ~ 1e-5 scale) and matches the original kernel's choice.
    gamma = gamma.astype(out_dtype)

    x2 = x.reshape(-1, dim)
    rows = x2.shape[0]
    itemsize = jnp.dtype(out_dtype).itemsize
    sublane = {4: 8, 2: 16, 1: 32}.get(itemsize, 8)

    # ---- lane-dense repacking for narrow dims (dim < 128) -------------------
    # Fold k consecutive rows into the lane axis: (rows, dim) -> (rows/k, k*dim),
    # gamma tiled k times. Pure layout plumbing (contiguous reshape); turns
    # masked partial stores into full-width lane-dense stores.
    k = 1
    if dim < 128:
        k_needed = 128 // math.gcd(dim, 128)
        if k_needed > 1 and rows % k_needed == 0:
            k = k_needed
    rows_eff = rows // k
    dim_eff = dim * k
    x2 = x2.reshape(rows_eff, dim_eff)
    gamma2 = (jnp.tile(gamma, k) if k > 1 else gamma).reshape(1, dim_eff)

    # ---- tile sizing by VMEM byte budget -------------------------------------
    tile_dim = dim_eff if dim_eff <= max_tile_dim else max_tile_dim
    bytes_per_row = tile_dim * itemsize
    tile_rows = max(sublane, (per_tile_bytes // bytes_per_row) // sublane * sublane)
    # Keep >= 4 row-blocks (when the input is big enough) so the "parallel" axis
    # still feeds both v7x TensorCores and the software pipeline has depth.
    cap = max(sublane, _round_up(pl.cdiv(rows_eff, 4), sublane))
    tile_rows = min(tile_rows, cap)
    if tile_rows >= rows_eff:
        tile_rows = rows_eff  # single full-extent block along rows (always legal)

    grid = (pl.cdiv(rows_eff, tile_rows), pl.cdiv(dim_eff, tile_dim))

    # Explicit scoped-VMEM limit: enough for 2x in-tile + 2x out-tile + gamma
    # (with headroom), clamped to [32 MiB, 48 MiB] which is safe on v5e/v6e/v7x.
    tile_bytes = tile_rows * tile_dim * itemsize
    vmem_need = int((4 * tile_bytes + 2 * tile_dim * itemsize) * 1.25)
    vmem_limit = int(min(max(vmem_need, 32 * 1024 * 1024), 48 * 1024 * 1024))

    out2 = pl.pallas_call(
        _layerscale_kernel,
        out_shape=jax.ShapeDtypeStruct((rows_eff, dim_eff), out_dtype),
        grid_spec=pltpu.PrefetchScalarGridSpec(
            num_scalar_prefetch=0,
            grid=grid,
            in_specs=[
                pl.BlockSpec((tile_rows, tile_dim), lambda i, j: (i, j)),
                pl.BlockSpec((1, tile_dim), lambda i, j: (0, j)),
            ],
            out_specs=pl.BlockSpec((tile_rows, tile_dim), lambda i, j: (i, j)),
        ),
        compiler_params=pltpu.CompilerParams(
            dimension_semantics=("parallel", "parallel"),
            vmem_limit_bytes=vmem_limit,
        ),
        input_output_aliases=({0: 0} if donate_x else {}),
    )(x2, gamma2)

    return out2.reshape(orig_shape)


if __name__ == "__main__":
    key = jax.random.PRNGKey(0)
    batch, seq, dim = 2, 8, 32
    init_values = 1e-5

    x = jax.random.normal(key, (batch, seq, dim), dtype=jnp.float32)
    # Deterministic parameter init, mirroring nn.Parameter(init_values * torch.ones(dim)).
    gamma = init_values * jnp.ones((dim,), dtype=jnp.float32)

    y = jax.block_until_ready(layer_scale(x, gamma))

    # Reference check against plain JAX broadcasting semantics.
    ref = x * gamma
    assert y.shape == x.shape and y.dtype == x.dtype
    assert jnp.allclose(y, ref, atol=0, rtol=0)

    print("KERNEL_OK")
</pallas_src>

<mosaic_0001>
module attributes {stable_mosaic.version = 11 : i64} {
  func.func @_layerscale_kernel(%arg0: i32, %arg1: i32, %arg2: memref<4x128xf32, #tpu.memory_space<vmem>>, %arg3: memref<1x128xf32, #tpu.memory_space<vmem>>, %arg4: memref<4x128xf32, #tpu.memory_space<vmem>>) attributes {dimension_semantics = [#tpu.dimension_semantics<parallel>, #tpu.dimension_semantics<parallel>], iteration_bounds = array<i64: 1, 1>, scalar_prefetch = 0 : i64, scratch_operands = 0 : i64, tpu.core_type = #tpu.core_type<tc>, window_params = [{transform_indices = @transform_0, window_bounds = array<i64: 4, 128>}, {transform_indices = @transform_1, window_bounds = array<i64: 1, 128>}, {transform_indices = @transform_2, window_bounds = array<i64: 4, 128>}]} {
    %c0 = arith.constant 0 : index
    %c0_0 = arith.constant 0 : index
    %0 = vector.load %arg2[%c0, %c0_0] : memref<4x128xf32, #tpu.memory_space<vmem>>, vector<4x128xf32>
    %c0_1 = arith.constant 0 : index
    %c0_2 = arith.constant 0 : index
    %1 = vector.load %arg3[%c0_1, %c0_2] : memref<1x128xf32, #tpu.memory_space<vmem>>, vector<1x128xf32>
    %2 = vector.broadcast %1 : vector<1x128xf32> to vector<4x128xf32>
    %3 = arith.mulf %0, %2 : vector<4x128xf32>
    %c0_3 = arith.constant 0 : index
    %c0_4 = arith.constant 0 : index
    %4 = vector.load %arg4[%c0_3, %c0_4] : memref<4x128xf32, #tpu.memory_space<vmem>>, vector<4x128xf32>
    tpu.vector_store %arg4[%c0_3, %c0_4], %3 {strides = array<i32>} : memref<4x128xf32, #tpu.memory_space<vmem>>, vector<4x128xf32>,
    return
  }
  func.func @transform_0(%arg0: i32, %arg1: i32) -> (i32, i32) {
    %c0_i32 = arith.constant 0 : i32
    return %arg0, %arg1 : i32, i32
  }
  func.func @transform_1(%arg0: i32, %arg1: i32) -> (i32, i32) {
    %c0_i32 = arith.constant 0 : i32
    %c0_i32_0 = arith.constant 0 : i32
    return %c0_i32, %arg1 : i32, i32
  }
  func.func @transform_2(%arg0: i32, %arg1: i32) -> (i32, i32) {
    %c0_i32 = arith.constant 0 : i32
    return %arg0, %arg1 : i32, i32
  }
}

</mosaic_0001>

<llo_original>
// kernel: tpu_custom_call.1
$region0: #{tpu_custom_call.1}
  #allocation0 [shape = 'u32[]', space=smem, size = 0x4, offset = 0x4, fixed_abs, tag = 'smem constant byte address 0x4 - core index']
  #allocation1 [shape = 'u32[144,128]{1,0:T(1,128)}', space=vmem, size = 0x12000, scoped, tag = 'internal scratch']
  %s0 = inlined_call_operand.hbm [shape: f32[4,128], index: 0, kind: input, shape index: {}]
  %s1 = inlined_call_operand.vmem [shape: f32[1,128], index: 1, kind: input, shape index: {}]
  %s2 = inlined_call_operand.hbm [shape: f32[4,128], index: 2, kind: output, shape index: {}]
  %s3 = sld [smem:[#allocation0]]
  $region22: #{tpu_custom_call.1} parent=0
    _
  %s5 = ssub.s32 1, %s3
  %s6 = scalar_select 0, %s5, %s3
  $region1: #{tpu_custom_call.1} parent=0
    #allocation2 [shape = 'u8[2048]{0}', space=vmem, size = 0x800, scoped, tag = 'input window, operand 0, single buffered']
    #allocation3 [shape = 's32[1]{0}', space=sflag, size = 0x4, scoped, tag = 'scoped memory for tpu_custom_call.1']
    #allocation4 [shape = 's32[1]{0}', space=sflag, size = 0x4, scoped, tag = 'scoped memory for tpu_custom_call.1']
    #allocation5 [shape = 'u8[2048]{0}', space=vmem, size = 0x800, scoped, tag = 'output window, operand 0, single buffered']
    %7 = vsyncpa [#allocation3], 0
    %8 = vsyncpa [#allocation4], 0
    // Predicated region
    $region2: #{tpu_custom_call.1} parent=1 // pred_check
      _
    $region3: #{tpu_custom_call.1} parent=1 // pred_check_branch
      %10 = sbr.rel (0) target = $region5
    $region4: #{tpu_custom_call.1} parent=1 // pred_region
      %s12 = ssub.s32 64, 64
      %13 = vsyncadd [#allocation3], %s12
      %s15 = sshll.u32 [#allocation2], 4
      %s16 = int_to_ptr.vmem [resolvable:$true] %s15
      %18 = dma.hbm_to_vmem [thread:$0]  %s0, 64, %s16, [#allocation3]
    $region5: #{tpu_custom_call.1} parent=1 // pred_fallthru
      _
    // Predicated region
    $region6: #{tpu_custom_call.1} parent=1 // pred_check
      _
    $region7: #{tpu_custom_call.1} parent=1 // pred_check_branch
      %20 = sbr.rel (0) target = $region9
    $region8: #{tpu_custom_call.1} parent=1 // pred_region
      _
    $region9: #{tpu_custom_call.1} parent=1 // pred_fallthru
      _
    // Predicated region
    $region10: #{tpu_custom_call.1} parent=1 // pred_check
      _
    $region11: #{tpu_custom_call.1} parent=1 // pred_check_branch
      %22 = sbr.rel (0) target = $region13
    $region12: #{tpu_custom_call.1} parent=1 // pred_region
      %23 = dma.done [#allocation3], 64
    $region13: #{tpu_custom_call.1} parent=1 // pred_fallthru
      _
    %v24 = vld [vmem:[#allocation2] sm:$0xf]
    %v25 = vld [vmem:[%s1] sm:$0x1]
    %v27 = vlaneseq
    %v28 = vshrl.u32 %v27, 7
    %v29 = vsub.s32 0, %v28
    %v30 = vrot.slane %v25, %v29
    %v32 = vmul.f32 %v24, %v30
    %33 = vst [vmem:[#allocation5] sm:$0xf] %v32
    // Predicated region
    $region14: #{tpu_custom_call.1} parent=1 // pred_check
      _
    $region15: #{tpu_custom_call.1} parent=1 // pred_check_branch
      %35 = sbr.rel (0) target = $region17
    $region16: #{tpu_custom_call.1} parent=1 // pred_region
      %s37 = ssub.s32 64, 64
      %38 = vsyncadd [#allocation4], %s37
      %s40 = sshll.u32 [#allocation5], 4
      %s41 = int_to_ptr.vmem [resolvable:$true] %s40
      %43 = dma.vmem_to_hbm [thread:$0]  %s41, 64, %s2, [#allocation4]
    $region17: #{tpu_custom_call.1} parent=1 // pred_fallthru
      _
    // Predicated region
    $region18: #{tpu_custom_call.1} parent=1 // pred_check
      _
    $region19: #{tpu_custom_call.1} parent=1 // pred_check_branch
      %45 = sbr.rel (0) target = $region21
    $region20: #{tpu_custom_call.1} parent=1 // pred_region
      %46 = dma.done [#allocation4], 64
    $region21: #{tpu_custom_call.1} parent=1 // pred_fallthru
      _
    %47 = vsyncpa [#allocation3], 1
    %48 = vsyncpa [#allocation4], 1

</llo_original>
